<compile_context>
chip_gen: v5e
topology: v5e:2x2
jax: 0.10.0
libtpu: 0.0.40
codegen_flags: <defaults>
</compile_context>

<pallas_src>
import functools

import jax
import jax.numpy as jnp
from jax.experimental import pallas as pl
from jax.experimental.pallas import tpu as pltpu

EPS = 1e-5                       # PyTorch BatchNorm2d default eps
VMEM_LIMIT = 48 * 1024 * 1024    # safe on v5e/v6e (128 MiB phys) and v7x (64 MiB)


def _round_up(x, m):
    return (x + m - 1) // m * m


# --------------------------------------------------------------------------
# Pallas tiled matmul (all conv GEMMs): bf16 operands, f32 accumulator
# --------------------------------------------------------------------------
def _matmul_kernel(a_ref, b_ref, o_ref, acc_ref):
    @pl.when(pl.program_id(2) == 0)
    def _():
        acc_ref[...] = jnp.zeros_like(acc_ref)

    acc_ref[...] += jnp.dot(a_ref[...], b_ref[...],
                            preferred_element_type=jnp.float32)

    @pl.when(pl.program_id(2) == pl.num_programs(2) - 1)
    def _():
        o_ref[...] = acc_ref[...].astype(o_ref.dtype)


@functools.lru_cache(maxsize=None)
def _build_matmul(mp, kp, np_, tm, tn, tk):
    return pl.pallas_call(
        _matmul_kernel,
        out_shape=jax.ShapeDtypeStruct((mp, np_), jnp.bfloat16),
        grid_spec=pltpu.PrefetchScalarGridSpec(
            num_scalar_prefetch=0,
            grid=(mp // tm, np_ // tn, kp // tk),
            in_specs=[pl.BlockSpec((tm, tk), lambda i, j, k: (i, k)),
                      pl.BlockSpec((tk, tn), lambda i, j, k: (k, j))],
            out_specs=pl.BlockSpec((tm, tn), lambda i, j, k: (i, j)),
            scratch_shapes=[pltpu.VMEM((tm, tn), jnp.float32)]),
        compiler_params=pltpu.CompilerParams(
            dimension_semantics=("parallel", "parallel", "arbitrary"),
            vmem_limit_bytes=VMEM_LIMIT),
    )


def pallas_matmul(a_bf16, b_bf16):
    """(m, kp) bf16 @ (kp, np) bf16 -> (m, np) bf16.  kp, np must be %128==0."""
    m, kp = a_bf16.shape
    kp2, np_ = b_bf16.shape
    assert kp == kp2 and kp % 128 == 0 and np_ % 128 == 0
    tk = 256 if kp % 256 == 0 else 128
    tn = 256 if np_ % 256 == 0 else 128
    if m >= 512 and m % 512 == 0:
        tm = 512
    elif m >= 256:
        tm = 256
    else:
        tm = _round_up(m, 16)
    mp = _round_up(m, tm)
    if mp != m:
        a_bf16 = jnp.pad(a_bf16, ((0, mp - m), (0, 0)))
    out = _build_matmul(mp, kp, np_, tm, tn, tk)(a_bf16, b_bf16)
    return out[:m]


# --------------------------------------------------------------------------
# Pallas tiled BatchNorm: pass 1 = per-channel sum / sumsq (f32 accumulator),
# pass 2 = fused scale*x + shift (+ scaled residual) (+ ReLU), bf16 output.
# --------------------------------------------------------------------------
def _bn_stats_kernel(x_ref, sum_ref, sq_ref):
    @pl.when(pl.program_id(0) == 0)
    def _():
        sum_ref[...] = jnp.zeros_like(sum_ref)
        sq_ref[...] = jnp.zeros_like(sq_ref)

    x = x_ref[...].astype(jnp.float32)
    sum_ref[...] += jnp.sum(x, axis=0, keepdims=True)
    sq_ref[...] += jnp.sum(x * x, axis=0, keepdims=True)


def _affine_kernel(x_ref, s_ref, b_ref, o_ref, *, relu):
    y = x_ref[...].astype(jnp.float32) * s_ref[...] + b_ref[...]
    if relu:
        y = jnp.maximum(y, 0.0)
    o_ref[...] = y.astype(o_ref.dtype)


def _affine_res_kernel(x_ref, s_ref, b_ref, r_ref, rs_ref, rb_ref, o_ref, *, relu):
    y = x_ref[...].astype(jnp.float32) * s_ref[...] + b_ref[...]
    y = y + r_ref[...].astype(jnp.float32) * rs_ref[...] + rb_ref[...]
    if relu:
        y = jnp.maximum(y, 0.0)
    o_ref[...] = y.astype(o_ref.dtype)


@functools.lru_cache(maxsize=None)
def _build_bn_stats(rp, c, tr):
    return pl.pallas_call(
        _bn_stats_kernel,
        out_shape=(jax.ShapeDtypeStruct((1, c), jnp.float32),
                   jax.ShapeDtypeStruct((1, c), jnp.float32)),
        grid_spec=pltpu.PrefetchScalarGridSpec(
            num_scalar_prefetch=0,
            grid=(rp // tr,),
            in_specs=[pl.BlockSpec((tr, c), lambda i: (i, 0))],
            out_specs=[pl.BlockSpec((1, c), lambda i: (0, 0)),
                       pl.BlockSpec((1, c), lambda i: (0, 0))]),
        compiler_params=pltpu.CompilerParams(
            dimension_semantics=("arbitrary",),
            vmem_limit_bytes=VMEM_LIMIT),
    )


@functools.lru_cache(maxsize=None)
def _build_affine(rp, c, tr, relu, residual):
    row = lambda i: (i, 0)
    bcast = lambda i: (0, 0)
    if residual:
        kern = functools.partial(_affine_res_kernel, relu=relu)
        in_specs = [pl.BlockSpec((tr, c), row),
                    pl.BlockSpec((1, c), bcast), pl.BlockSpec((1, c), bcast),
                    pl.BlockSpec((tr, c), row),
                    pl.BlockSpec((1, c), bcast), pl.BlockSpec((1, c), bcast)]
    else:
        kern = functools.partial(_affine_kernel, relu=relu)
        in_specs = [pl.BlockSpec((tr, c), row),
                    pl.BlockSpec((1, c), bcast), pl.BlockSpec((1, c), bcast)]
    return pl.pallas_call(
        kern,
        out_shape=jax.ShapeDtypeStruct((rp, c), jnp.bfloat16),
        grid_spec=pltpu.PrefetchScalarGridSpec(
            num_scalar_prefetch=0,
            grid=(rp // tr,),
            in_specs=in_specs,
            out_specs=pl.BlockSpec((tr, c), row)),
        compiler_params=pltpu.CompilerParams(
            dimension_semantics=("parallel",),   # megacore-shard on v7x
            vmem_limit_bytes=VMEM_LIMIT),
    )


def _row_tile(r, c):
    # target ~2 MiB bf16 per streamed row-tile (multiple of 16 rows)
    target = max(256, (2 * 1024 * 1024) // (2 * c))
    target = max(16, (target // 16) * 16)
    if r <= target:
        return _round_up(r, 16)
    return target


def _pad_rows(x2d, rp):
    r = x2d.shape[0]
    return jnp.pad(x2d, ((0, rp - r), (0, 0))) if rp != r else x2d


def bn_scale_shift(s, sq, count, gamma, beta):
    """Fold batch stats + (gamma, beta) into per-channel scale/shift (f32)."""
    mean = s[0] / count
    var = jnp.maximum(sq[0] / count - mean * mean, 0.0)  # biased, as PyTorch fwd
    inv_std = jax.lax.rsqrt(var + EPS)
    scale = gamma.astype(jnp.float32) * inv_std
    shift = beta.astype(jnp.float32) - mean * scale
    return scale.reshape(1, -1), shift.reshape(1, -1)


def bn_fold(x2d, gamma, beta):
    """Compute BN stats of x2d and return folded (scale, shift) only."""
    r, c = x2d.shape
    tr = _row_tile(r, c)
    rp = _round_up(r, tr)
    s, sq = _build_bn_stats(rp, c, tr)(_pad_rows(x2d, rp))
    return bn_scale_shift(s, sq, r, gamma, beta)


def batchnorm(x2d, gamma, beta, relu=False, res=None, res_scale=None, res_shift=None):
    """Training-mode BN (+ optional pre-scaled residual) (+ optional ReLU)."""
    r, c = x2d.shape
    tr = _row_tile(r, c)
    rp = _round_up(r, tr)
    xp = _pad_rows(x2d, rp)                      # zero rows: no effect on sum/sumsq
    s, sq = _build_bn_stats(rp, c, tr)(xp)
    scale, shift = bn_scale_shift(s, sq, r, gamma, beta)
    if res is None:
        out = _build_affine(rp, c, tr, bool(relu), False)(xp, scale, shift)
    else:
        out = _build_affine(rp, c, tr, bool(relu), True)(
            xp, scale, shift, _pad_rows(res, rp), res_scale, res_shift)
    return out[:r]


# --------------------------------------------------------------------------
# Conv (im2col glue + Pallas GEMM), pooling glue
# --------------------------------------------------------------------------
def prep_conv_weight(w_oihw):
    """OIHW f32 -> padded (kh*kw*cin -> %128, cout -> %128) bf16 GEMM matrix."""
    o, ci, kh, kw = w_oihw.shape
    k = kh * kw * ci
    wmat = jnp.transpose(w_oihw, (2, 3, 1, 0)).reshape(k, o)
    kp, np_ = _round_up(k, 128), _round_up(o, 128)
    wmat = jnp.pad(wmat, ((0, kp - k), (0, np_ - o))).astype(jnp.bfloat16)
    return {"wmat": wmat, "cout": o, "kh": kh, "kw": kw, "k": k}


def conv2d(x_nhwc, wprep, stride, pad):
    # TODO(synk): im2col is still materialized in HBM; a direct shifted-window
    # Pallas conv (K grid axis over kh*kw*cin) would remove this traffic.
    n, h, w, cin = x_nhwc.shape
    kh, kw = wprep["kh"], wprep["kw"]
    xp = jnp.pad(x_nhwc, ((0, 0), (pad, pad), (pad, pad), (0, 0))) if pad > 0 else x_nhwc
    hp, wp = h + 2 * pad, w + 2 * pad
    oh = (hp - kh) // stride + 1
    ow = (wp - kw) // stride + 1
    if kh == 1 and kw == 1:
        a = xp[:, 0:stride * (oh - 1) + 1:stride,
               0:stride * (ow - 1) + 1:stride, :].reshape(n * oh * ow, cin)
    else:
        cols = []
        for i in range(kh):
            for j in range(kw):
                cols.append(xp[:, i:i + stride * (oh - 1) + 1:stride,
                               j:j + stride * (ow - 1) + 1:stride, :])
        a = jnp.concatenate(cols, axis=-1).reshape(n * oh * ow, kh * kw * cin)
    k = wprep["k"]
    kp = wprep["wmat"].shape[0]
    if kp != k:
        a = jnp.pad(a, ((0, 0), (0, kp - k)))
    y = pallas_matmul(a.astype(jnp.bfloat16), wprep["wmat"])
    return y[:, :wprep["cout"]].reshape(n, oh, ow, wprep["cout"])


def maxpool_3x3_s2_p1(x_nhwc):
    n, h, w, c = x_nhwc.shape
    xp = jnp.pad(x_nhwc, ((0, 0), (1, 1), (1, 1), (0, 0)),
                 constant_values=-jnp.inf)
    oh = (h + 2 - 3) // 2 + 1
    ow = (w + 2 - 3) // 2 + 1
    out = None
    for i in range(3):
        for j in range(3):
            s = xp[:, i:i + 2 * (oh - 1) + 1:2, j:j + 2 * (ow - 1) + 1:2, :]
            out = s if out is None else jnp.maximum(out, s)
    return out


# --------------------------------------------------------------------------
# Parameters (ResNet-34 shapes, conv1: 12 in-channels, fc -> 4)
# --------------------------------------------------------------------------
def _conv_init(key, o, i, kh, kw):
    fan_in = i * kh * kw
    return jax.random.normal(key, (o, i, kh, kw), jnp.float32) * (2.0 / fan_in) ** 0.5


def init_params(key):
    keys = iter(jax.random.split(key, 256))
    params = {
        "conv1": prep_conv_weight(_conv_init(next(keys), 64, 12, 7, 7)),
        "bn1": (jnp.ones(64, jnp.float32), jnp.zeros(64, jnp.float32)),
    }
    layer_cfg = [(64, 3, 1), (128, 4, 2), (256, 6, 2), (512, 3, 2)]  # ResNet-34
    in_c = 64
    for li, (width, nblocks, stride) in enumerate(layer_cfg):
        blocks = []
        for bi in range(nblocks):
            s = stride if bi == 0 else 1
            blk = {
                "conv1": prep_conv_weight(_conv_init(next(keys), width, in_c, 3, 3)),
                "bn1": (jnp.ones(width, jnp.float32), jnp.zeros(width, jnp.float32)),
                "conv2": prep_conv_weight(_conv_init(next(keys), width, width, 3, 3)),
                "bn2": (jnp.ones(width, jnp.float32), jnp.zeros(width, jnp.float32)),
                "stride": s,
            }
            if s != 1 or in_c != width:
                blk["down_conv"] = prep_conv_weight(_conv_init(next(keys), width, in_c, 1, 1))
                blk["down_bn"] = (jnp.ones(width, jnp.float32),
                                  jnp.zeros(width, jnp.float32))
            blocks.append(blk)
            in_c = width
        params[f"layer{li + 1}"] = blocks
    kw_, kb_ = jax.random.split(next(keys))
    bound = 1.0 / (512 ** 0.5)
    params["fc_w"] = jax.random.uniform(kw_, (4, 512), jnp.float32, -bound, bound)
    params["fc_b"] = jax.random.uniform(kb_, (4,), jnp.float32, -bound, bound)
    return params


# --------------------------------------------------------------------------
# Forward pass
# --------------------------------------------------------------------------
def basic_block(x, blk):
    n, h, w, c_in = x.shape
    s = blk["stride"]
    out = conv2d(x, blk["conv1"], s, 1)
    n2, oh, ow, width = out.shape
    out2d = batchnorm(out.reshape(-1, width), *blk["bn1"], relu=True)
    out = conv2d(out2d.reshape(n2, oh, ow, width), blk["conv2"], 1, 1)
    out2d = out.reshape(-1, width)

    if "down_conv" in blk:
        # downsample BN folded into the residual add of bn2 (no extra round trip)
        idn2d = conv2d(x, blk["down_conv"], s, 0).reshape(-1, width)
        rsc, rsh = bn_fold(idn2d, *blk["down_bn"])
    else:
        idn2d = x.reshape(-1, c_in)
        rsc = jnp.ones((1, width), jnp.float32)
        rsh = jnp.zeros((1, width), jnp.float32)

    out2d = batchnorm(out2d, *blk["bn2"], relu=True,
                      res=idn2d, res_scale=rsc, res_shift=rsh)
    return out2d.reshape(n2, oh, ow, width)


def resnet_forward(params, x_nchw):
    # NCHW (PyTorch) -> NHWC, bf16 activations between kernels
    x = jnp.transpose(x_nchw, (0, 2, 3, 1)).astype(jnp.bfloat16)
    x = conv2d(x, params["conv1"], 2, 3)
    n, h, w, c = x.shape
    x = batchnorm(x.reshape(-1, c), *params["bn1"], relu=True).reshape(n, h, w, c)
    x = maxpool_3x3_s2_p1(x)
    for li in range(4):
        for blk in params[f"layer{li + 1}"]:
            x = basic_block(x, blk)
    feat = jnp.mean(x.astype(jnp.float32), axis=(1, 2))          # (N, 512)
    logits = feat @ params["fc_w"].T + params["fc_b"]            # tiny: plain JAX
    return logits                                                # (N, 4)


if __name__ == "__main__":
    key = jax.random.PRNGKey(0)
    pkey, xkey = jax.random.split(key)
    params = init_params(pkey)
    # conv1 expects 12 input channels; small spatial size for a quick run
    x = jax.random.normal(xkey, (2, 12, 16, 16), jnp.float32)
    out = resnet_forward(params, x)
    out = jax.block_until_ready(out)
    assert out.shape == (2, 4)
    print("KERNEL_OK")
</pallas_src>

<mosaic_0001>
module attributes {stable_mosaic.version = 11 : i64} {
  func.func @_matmul_kernel(%arg0: i32, %arg1: i32, %arg2: i32, %arg3: memref<128x128xbf16, #tpu.memory_space<vmem>>, %arg4: memref<128x128xbf16, #tpu.memory_space<vmem>>, %arg5: memref<128x128xbf16, #tpu.memory_space<vmem>>, %arg6: memref<128x128xf32, #tpu.memory_space<vmem>>) attributes {dimension_semantics = [#tpu.dimension_semantics<parallel>, #tpu.dimension_semantics<parallel>, #tpu.dimension_semantics<arbitrary>], iteration_bounds = array<i64: 1, 1, 5>, scalar_prefetch = 0 : i64, scratch_operands = 1 : i64, tpu.core_type = #tpu.core_type<tc>, window_params = [{transform_indices = @transform_0, window_bounds = array<i64: 128, 128>}, {transform_indices = @transform_1, window_bounds = array<i64: 128, 128>}, {transform_indices = @transform_2, window_bounds = array<i64: 128, 128>}]} {
    %c0_i32 = arith.constant 0 : i32
    %0 = arith.cmpi eq, %arg2, %c0_i32 : i32
    %1 = arith.extui %0 : i1 to i32
    %c0_i32_0 = arith.constant 0 : i32
    %2 = arith.cmpi ne, %1, %c0_i32_0 : i32
    scf.if %2 {
      %cst_9 = arith.constant 0.000000e+00 : f32
      %12 = vector.broadcast %cst_9 : f32 to vector<128x128xf32>
      %c0_10 = arith.constant 0 : index
      %c0_11 = arith.constant 0 : index
      %13 = vector.load %arg6[%c0_10, %c0_11] : memref<128x128xf32, #tpu.memory_space<vmem>>, vector<128x128xf32>
      tpu.vector_store %arg6[%c0_10, %c0_11], %12 {strides = array<i32>} : memref<128x128xf32, #tpu.memory_space<vmem>>, vector<128x128xf32>,
    } else {
    }
    %c0 = arith.constant 0 : index
    %c0_1 = arith.constant 0 : index
    %3 = vector.load %arg6[%c0, %c0_1] : memref<128x128xf32, #tpu.memory_space<vmem>>, vector<128x128xf32>
    %c0_2 = arith.constant 0 : index
    %c0_3 = arith.constant 0 : index
    %4 = vector.load %arg3[%c0_2, %c0_3] : memref<128x128xbf16, #tpu.memory_space<vmem>>, vector<128x128xbf16>
    %c0_4 = arith.constant 0 : index
    %c0_5 = arith.constant 0 : index
    %5 = vector.load %arg4[%c0_4, %c0_5] : memref<128x128xbf16, #tpu.memory_space<vmem>>, vector<128x128xbf16>
    %cst = arith.constant dense<0.000000e+00> : vector<128x128xf32>
    %6 = tpu.matmul %4, %5, %cst {dimension_numbers = #tpu.dot_dimension_numbers<[1], [0], [0], [1], [0, 0, 1, 1], [], []>} : vector<128x128xbf16>, vector<128x128xbf16>, vector<128x128xf32> -> vector<128x128xf32>
    %7 = arith.addf %3, %6 : vector<128x128xf32>
    %c0_6 = arith.constant 0 : index
    %c0_7 = arith.constant 0 : index
    %8 = vector.load %arg6[%c0_6, %c0_7] : memref<128x128xf32, #tpu.memory_space<vmem>>, vector<128x128xf32>
    tpu.vector_store %arg6[%c0_6, %c0_7], %7 {strides = array<i32>} : memref<128x128xf32, #tpu.memory_space<vmem>>, vector<128x128xf32>,
    %c4_i32 = arith.constant 4 : i32
    %9 = arith.cmpi eq, %arg2, %c4_i32 : i32
    %10 = arith.extui %9 : i1 to i32
    %c0_i32_8 = arith.constant 0 : i32
    %11 = arith.cmpi ne, %10, %c0_i32_8 : i32
    scf.if %11 {
      %c0_9 = arith.constant 0 : index
      %c0_10 = arith.constant 0 : index
      %12 = vector.load %arg6[%c0_9, %c0_10] : memref<128x128xf32, #tpu.memory_space<vmem>>, vector<128x128xf32>
      %13 = arith.truncf %12 : vector<128x128xf32> to vector<128x128xbf16>
      %c0_11 = arith.constant 0 : index
      %c0_12 = arith.constant 0 : index
      %14 = vector.load %arg5[%c0_11, %c0_12] : memref<128x128xbf16, #tpu.memory_space<vmem>>, vector<128x128xbf16>
      tpu.vector_store %arg5[%c0_11, %c0_12], %13 {strides = array<i32>} : memref<128x128xbf16, #tpu.memory_space<vmem>>, vector<128x128xbf16>,
    } else {
    }
    return
  }
  func.func @transform_0(%arg0: i32, %arg1: i32, %arg2: i32) -> (i32, i32) {
    %c0_i32 = arith.constant 0 : i32
    return %arg0, %arg2 : i32, i32
  }
  func.func @transform_1(%arg0: i32, %arg1: i32, %arg2: i32) -> (i32, i32) {
    %c0_i32 = arith.constant 0 : i32
    return %arg2, %arg1 : i32, i32
  }
  func.func @transform_2(%arg0: i32, %arg1: i32, %arg2: i32) -> (i32, i32) {
    %c0_i32 = arith.constant 0 : i32
    return %arg0, %arg1 : i32, i32
  }
}

</mosaic_0001>

<llo_original>
// kernel: tpu_custom_call.1
$region0: #{tpu_custom_call.1}
  #allocation0 [shape = 'u32[]', space=smem, size = 0x4, offset = 0x4, fixed_abs, tag = 'smem constant byte address 0x4 - core index']
  #allocation1 [shape = 'u32[72,128]{1,0:T(1,128)}', space=vmem, size = 0x9000, scoped, tag = 'internal scratch']
  #allocation2 [shape = 'f32[128,128]{1,0:T(8,128)}', space=vmem, size = 0x10000, scoped, tag = 'scratch operand']
  %s0 = inlined_call_operand.hbm [shape: bf16[128,640], index: 0, kind: input, shape index: {}]
  %s1 = inlined_call_operand.hbm [shape: bf16[640,128], index: 1, kind: input, shape index: {}]
  %s2 = inlined_call_operand.hbm [shape: bf16[128,128], index: 2, kind: output, shape index: {}]
  %s3 = sld [smem:[#allocation0]]
  $region57: #{tpu_custom_call.1} parent=0
    _
  %s5 = ssub.s32 1, %s3
  %s6 = scalar_select 0, %s5, %s3
  $region1: #{tpu_custom_call.1} parent=0
    #allocation3 [shape = 'u8[65536]{0}', space=vmem, size = 0x10000, scoped, tag = 'input window, operand 0']
    #allocation4 [shape = 's32[2]{0}', space=sflag, size = 0x8, scoped, tag = 'scoped memory for tpu_custom_call.1']
    #allocation5 [shape = 's32[2]{0}', space=sflag, size = 0x8, scoped, tag = 'scoped memory for tpu_custom_call.1']
    #allocation6 [shape = 'u8[65536]{0}', space=vmem, size = 0x10000, scoped, tag = 'input window, operand 1']
    #allocation7 [shape = 's32[2]{0}', space=sflag, size = 0x8, scoped, tag = 'scoped memory for tpu_custom_call.1']
    #allocation8 [shape = 'u8[32768]{0}', space=vmem, size = 0x8000, scoped, tag = 'output window, operand 0, single buffered']
    %7 = vsyncpa [#allocation4], 0
    %s8 = scalar_lea.sflag [#allocation4], 1
    %9 = vsyncpa %s8, 0
    %10 = vsyncpa [#allocation7], 0
    %s11 = scalar_lea.sflag [#allocation7], 1
    %12 = vsyncpa %s11, 0
    %13 = vsyncpa [#allocation5], 0
    loop: start=0, step=1, limit=7
    $region2: #{tpu_custom_call.1} parent=1 // loop_pre_header
      _
    $region3: #{tpu_custom_call.1} parent=1 // loop_header
      %s15 = sphi 0, %s19
      %p16 = scmp.ge.s32.totalorder %s15, 7
      %s22 = sphi 0, %s41
      %s23 = sphi 0, %s37
      %s24 = sphi 0, %s33
      %s25 = sphi 0, %s22
      %s26 = sphi 0, %s23
      %s27 = sphi 0, %s24
      %s28 = sphi 0, %s25
      %s29 = sphi 0, %s26
      %s30 = sphi 0, %s27
      %s46 = sphi 0, %s48
      %s49 = sphi 0, %s46
      %s50 = sphi 0, %s49
      %s66 = sphi 0, %s50
      %s74 = sphi 0, %s76
      %s77 = sphi 0, %s74
      %s78 = sphi 0, %s77
      %s94 = sphi 0, %s78
      %s102 = sphi 0, %s104
      %s105 = sphi 0, %s102
      %s106 = sphi 0, %s105
      %s122 = sphi 0, %s106
    $region4: #{tpu_custom_call.1} parent=1 // loop_header_branch
      %18 = sbr.rel (%p16) target = $region8
    $region5: #{tpu_custom_call.1} parent=1 // loop_body
      %s20 = ssub.s32 %s15, 1
      %s21 = ssub.s32 %s15, 2
      %s31 = sadd.s32 1, %s24
      %p32 = scmp.ge.s32.totalorder %s31, 5
      %s33 = scalar_select %p32, 0, %s31
      %s34 = sadd.s32 1, %s23
      %s35 = scalar_select %p32, %s34, %s23
      %p36 = scmp.ge.s32.totalorder %s35, 1
      %s37 = scalar_select %p36, 0, %s35
      %s38 = sadd.s32 1, %s22
      %s39 = scalar_select %p36, %s38, %s22
      %p40 = scmp.ge.s32.totalorder %s39, 1
      %s41 = scalar_select %p40, 0, %s39
      %s42 = ssub.s32 %s22, %s41
      %s43 = ssub.s32 %s24, %s33
      %s44 = sor.u32 %s42, %s43
      %p45 = scmp.eq.s32.totalorder %s44, 0
      %s47 = sadd.s32 %s46, 1
      %s48 = scalar_select %p45, %s46, %s47
      %p51 = pneg %p45
      %p52 = scmp.eq.s32.totalorder %s15, 4
      %p53 = por %p51, %p52
      %p54 = scmp.ne.s32.totalorder %s46, %s49
      %p55 = scmp.eq.s32.totalorder %s15, 0
      %p56 = por %p54, %p55
      %p57 = scmp.ne.s32.totalorder %s46, %s49
      %p58 = scmp.eq.s32.totalorder %s20, 4
      %p59 = por %p57, %p58
      %p60 = scmp.ne.s32.totalorder %s49, %s50
      %p61 = scmp.eq.s32.totalorder %s20, 0
      %p62 = por %p60, %p61
      %p63 = scmp.ne.s32.totalorder %s49, %s50
      %p64 = scmp.eq.s32.totalorder %s21, 4
      %p65 = por %p63, %p64
      %p67 = scmp.ne.s32.totalorder %s50, %s66
      %p68 = scmp.eq.s32.totalorder %s21, 0
      %p69 = por %p67, %p68
      %s70 = ssub.s32 %s24, %s33
      %s71 = ssub.s32 %s23, %s37
      %s72 = sor.u32 %s70, %s71
      %p73 = scmp.eq.s32.totalorder %s72, 0
      %s75 = sadd.s32 %s74, 1
      %s76 = scalar_select %p73, %s74, %s75
      %p79 = pneg %p73
      %p80 = scmp.eq.s32.totalorder %s15, 4
      %p81 = por %p79, %p80
      %p82 = scmp.ne.s32.totalorder %s74, %s77
      %p83 = scmp.eq.s32.totalorder %s15, 0
      %p84 = por %p82, %p83
      %p85 = scmp.ne.s32.totalorder %s74, %s77
      %p86 = scmp.eq.s32.totalorder %s20, 4
      %p87 = por %p85, %p86
      %p88 = scmp.ne.s32.totalorder %s77, %s78
      %p89 = scmp.eq.s32.totalorder %s20, 0
      %p90 = por %p88, %p89
      %p91 = scmp.ne.s32.totalorder %s77, %s78
      %p92 = scmp.eq.s32.totalorder %s21, 4
      %p93 = por %p91, %p92
      %p95 = scmp.ne.s32.totalorder %s78, %s94
      %p96 = scmp.eq.s32.totalorder %s21, 0
      %p97 = por %p95, %p96
      %s98 = ssub.s32 %s22, %s41
      %s99 = ssub.s32 %s23, %s37
      %s100 = sor.u32 %s98, %s99
      %p101 = scmp.eq.s32.totalorder %s100, 0
      %s103 = sadd.s32 %s102, 1
      %s104 = scalar_select %p101, %s102, %s103
      %p107 = pneg %p101
      %p108 = scmp.eq.s32.totalorder %s15, 4
      %p109 = por %p107, %p108
      %p110 = scmp.ne.s32.totalorder %s102, %s105
      %p111 = scmp.eq.s32.totalorder %s15, 0
      %p112 = por %p110, %p111
      %p113 = scmp.ne.s32.totalorder %s102, %s105
      %p114 = scmp.eq.s32.totalorder %s20, 4
      %p115 = por %p113, %p114
      %p116 = scmp.ne.s32.totalorder %s105, %s106
      %p117 = scmp.eq.s32.totalorder %s20, 0
      %p118 = por %p116, %p117
      %p119 = scmp.ne.s32.totalorder %s105, %s106
      %p120 = scmp.eq.s32.totalorder %s21, 4
      %p121 = por %p119, %p120
      %p123 = scmp.ne.s32.totalorder %s106, %s122
      %p124 = scmp.eq.s32.totalorder %s21, 0
      %p125 = por %p123, %p124
      %p126 = scmp.le.s32.totalorder 1, %s15
      %p127 = scmp.lt.s32.totalorder %s15, 6
      %p128 = pnand %p126, %p127
      %p129 = pneg %p128
      // Predicated region
      $region9: #{tpu_custom_call.1} parent=5 // pred_check
        _
      $region10: #{tpu_custom_call.1} parent=5 // pred_check_branch
        %131 = sbr.rel (%p128) target = $region12
      $region11: #{tpu_custom_call.1} parent=5 // pred_region
        %s132 = ssub.s32 %s15, 1
      $region12: #{tpu_custom_call.1} parent=5 // pred_fallthru
        _
      %p133 = scmp.lt.s32.totalorder %s15, 5
      // Predicated region
      $region13: #{tpu_custom_call.1} parent=5 // pred_check
        %p134 = pneg %p133
      $region14: #{tpu_custom_call.1} parent=5 // pred_check_branch
        %136 = sbr.rel (%p134) target = $region16
      $region15: #{tpu_custom_call.1} parent=5 // pred_region
        // Predicated region
        $region17: #{tpu_custom_call.1} parent=15 // pred_check
          %p137 = pneg %p56
        $region18: #{tpu_custom_call.1} parent=15 // pred_check_branch
          %139 = sbr.rel (%p137) target = $region20
        $region19: #{tpu_custom_call.1} parent=15 // pred_region
          %s140 = sand.u32 %s46, 1
          %s141 = scalar_lea.sflag [#allocation4], %s140
          %s142 = sand.u32 %s46, 1
          %s143 = smul.addr %s142, 64
          %s144 = scalar_lea.vmem [#allocation3], %s143
          %s145 = smul.u32 16, %s22
          %147 = vsyncadd %s141, 0
          %s148 = smul.addr %s145, 5
          %s149 = sadd.s32 %s24, %s148
          %s150 = smul.addr %s149, 4
          %s151 = scalar_lea.hbm %s0, %s150
          %s152 = sshll.u32 %s151, 4
          %s153 = int_to_ptr.hbm [resolvable:$true] %s152
          %s154 = sshll.u32 %s144, 4
          %s155 = int_to_ptr.vmem [resolvable:$true] %s154
          %160 = dma.hbm_to_vmem [thread:$0]  %s153, 1024, %s155, %s141, 320, 64, 4
        $region20: #{tpu_custom_call.1} parent=15 // pred_fallthru
          _
        // Predicated region
        $region21: #{tpu_custom_call.1} parent=15 // pred_check
          %p161 = pneg %p84
        $region22: #{tpu_custom_call.1} parent=15 // pred_check_branch
          %163 = sbr.rel (%p161) target = $region24
        $region23: #{tpu_custom_call.1} parent=15 // pred_region
          %s164 = sand.u32 %s74, 1
          %s165 = scalar_lea.sflag [#allocation7], %s164
          %s166 = sand.u32 %s74, 1
          %s167 = smul.addr %s166, 64
          %s168 = scalar_lea.vmem [#allocation6], %s167
          %s169 = smul.u32 16, %s24
          %171 = vsyncadd %s165, 0
          %s172 = sadd.s32 %s23, %s169
          %s173 = smul.addr %s172, 4
          %s174 = scalar_lea.hbm %s1, %s173
          %s175 = sshll.u32 %s174, 4
          %s176 = int_to_ptr.hbm [resolvable:$true] %s175
          %s177 = sshll.u32 %s168, 4
          %s178 = int_to_ptr.vmem [resolvable:$true] %s177
          %183 = dma.hbm_to_vmem [thread:$0]  %s176, 1024, %s178, %s165, 64, 64, 4
        $region24: #{tpu_custom_call.1} parent=15 // pred_fallthru
          _
      $region16: #{tpu_custom_call.1} parent=5 // pred_fallthru
        _
      %p184 = scmp.le.s32.totalorder 1, %s15
      %p185 = scmp.lt.s32.totalorder %s15, 6
      %p186 = pnand %p184, %p185
      %p187 = pneg %p186
      // Predicated region
      $region25: #{tpu_custom_call.1} parent=5 // pred_check
        _
      $region26: #{tpu_custom_call.1} parent=5 // pred_check_branch
        %189 = sbr.rel (%p186) target = $region28
      $region27: #{tpu_custom_call.1} parent=5 // pred_region
        %s190 = ssub.s32 %s15, 1
        %s191 = sand.u32 %s49, 1
        %s192 = scalar_lea.sflag [#allocation4], %s191
        %s193 = sand.u32 %s49, 1
        %s194 = smul.addr %s193, 64
        %s195 = scalar_lea.vmem [#allocation3], %s194
        // Predicated region
        $region29: #{tpu_custom_call.1} parent=27 // pred_check
          %p196 = pneg %p62
        $region30: #{tpu_custom_call.1} parent=27 // pred_check_branch
          %198 = sbr.rel (%p196) target = $region32
        $region31: #{tpu_custom_call.1} parent=27 // pred_region
          %200 = dma.done %s192, 1024
        $region32: #{tpu_custom_call.1} parent=27 // pred_fallthru
          _
        %s201 = sand.u32 %s77, 1
        %s202 = scalar_lea.sflag [#allocation7], %s201
        %s203 = sand.u32 %s77, 1
        %s204 = smul.addr %s203, 64
        %s205 = scalar_lea.vmem [#allocation6], %s204
        // Predicated region
        $region33: #{tpu_custom_call.1} parent=27 // pred_check
          %p206 = pneg %p90
        $region34: #{tpu_custom_call.1} parent=27 // pred_check_branch
          %208 = sbr.rel (%p206) target = $region36
        $region35: #{tpu_custom_call.1} parent=27 // pred_region
          %210 = dma.done %s202, 1024
        $region36: #{tpu_custom_call.1} parent=27 // pred_fallthru
          _
        %s211 = sand.u32 %s49, 1
        %s212 = scalar_lea.sflag [#allocation4], %s211
        %s213 = sand.u32 %s49, 1
        %s214 = smul.addr %s213, 64
        %s215 = scalar_lea.vmem [#allocation3], %s214
        %p216 = pneg %p62
        %p217 = pneg %p59
        %s218 = sand.u32 %s77, 1
        %s219 = scalar_lea.sflag [#allocation7], %s218
        %s220 = sand.u32 %s77, 1
        %s221 = smul.addr %s220, 64
        %s222 = scalar_lea.vmem [#allocation6], %s221
        %p223 = pneg %p90
        %p224 = pneg %p87
        %p225 = pneg %p118
        %p226 = pneg %p115
        %s227 = smul.u32 16, %s25
        %s228 = smul.u32 16, %s27
        %s229 = smul.u32 16, %s25
        %p230 = scmp.eq.s32.totalorder %s27, 0
        // Predicated region
        $region37: #{tpu_custom_call.1} parent=27 // pred_check
          %p231 = pneg %p230
        $region38: #{tpu_custom_call.1} parent=27 // pred_check_branch
          %233 = sbr.rel (%p231) target = $region40
        $region39: #{tpu_custom_call.1} parent=27 // pred_region
          %234 = vst [vmem:[#allocation2] sm:$0xff] 0.0
          %235 = vst [vmem:[#allocation2 + $0x8] sm:$0xff] 0.0
          %236 = vst [vmem:[#allocation2 + $0x10] sm:$0xff] 0.0
          %237 = vst [vmem:[#allocation2 + $0x18] sm:$0xff] 0.0
          %238 = vst [vmem:[#allocation2 + $0x20] sm:$0xff] 0.0
          %239 = vst [vmem:[#allocation2 + $0x28] sm:$0xff] 0.0
          %240 = vst [vmem:[#allocation2 + $0x30] sm:$0xff] 0.0
          %241 = vst [vmem:[#allocation2 + $0x38] sm:$0xff] 0.0
          %242 = vst [vmem:[#allocation2 + $0x40] sm:$0xff] 0.0
          %243 = vst [vmem:[#allocation2 + $0x48] sm:$0xff] 0.0
          %244 = vst [vmem:[#allocation2 + $0x50] sm:$0xff] 0.0
          %245 = vst [vmem:[#allocation2 + $0x58] sm:$0xff] 0.0
          %246 = vst [vmem:[#allocation2 + $0x60] sm:$0xff] 0.0
          %247 = vst [vmem:[#allocation2 + $0x68] sm:$0xff] 0.0
          %248 = vst [vmem:[#allocation2 + $0x70] sm:$0xff] 0.0
          %249 = vst [vmem:[#allocation2 + $0x78] sm:$0xff] 0.0
        $region40: #{tpu_custom_call.1} parent=27 // pred_fallthru
          _
        %v250 = vld [vmem:[#allocation2] sm:$0xff]
        %v251 = vld [vmem:[#allocation2 + $0x8] sm:$0xff]
        %v252 = vld [vmem:[#allocation2 + $0x10] sm:$0xff]
        %v253 = vld [vmem:[#allocation2 + $0x18] sm:$0xff]
        %v254 = vld [vmem:[#allocation2 + $0x20] sm:$0xff]
        %v255 = vld [vmem:[#allocation2 + $0x28] sm:$0xff]
        %v256 = vld [vmem:[#allocation2 + $0x30] sm:$0xff]
        %v257 = vld [vmem:[#allocation2 + $0x38] sm:$0xff]
        %v258 = vld [vmem:[#allocation2 + $0x40] sm:$0xff]
        %v259 = vld [vmem:[#allocation2 + $0x48] sm:$0xff]
        %v260 = vld [vmem:[#allocation2 + $0x50] sm:$0xff]
        %v261 = vld [vmem:[#allocation2 + $0x58] sm:$0xff]
        %v262 = vld [vmem:[#allocation2 + $0x60] sm:$0xff]
        %v263 = vld [vmem:[#allocation2 + $0x68] sm:$0xff]
        %v264 = vld [vmem:[#allocation2 + $0x70] sm:$0xff]
        %v265 = vld [vmem:[#allocation2 + $0x78] sm:$0xff]
        %v266 = vld [vmem:[%s195] sm:$0xf]
        %v267 = vld [vmem:[%s195 + $0x4] sm:$0xf]
        %v268 = vld [vmem:[%s195 + $0x8] sm:$0xf]
        %v269 = vld [vmem:[%s195 + $0xc] sm:$0xf]
        %v270 = vld [vmem:[%s195 + $0x10] sm:$0xf]
        %v271 = vld [vmem:[%s195 + $0x14] sm:$0xf]
        %v272 = vld [vmem:[%s195 + $0x18] sm:$0xf]
        %v273 = vld [vmem:[%s195 + $0x1c] sm:$0xf]
        %v274 = vld [vmem:[%s195 + $0x20] sm:$0xf]
        %v275 = vld [vmem:[%s195 + $0x24] sm:$0xf]
        %v276 = vld [vmem:[%s195 + $0x28] sm:$0xf]
        %v277 = vld [vmem:[%s195 + $0x2c] sm:$0xf]
        %v278 = vld [vmem:[%s195 + $0x30] sm:$0xf]
        %v279 = vld [vmem:[%s195 + $0x34] sm:$0xf]
        %v280 = vld [vmem:[%s195 + $0x38] sm:$0xf]
        %v281 = vld [vmem:[%s195 + $0x3c] sm:$0xf]
        %v282 = vld [vmem:[%s205] sm:$0xf]
        %v283 = vld [vmem:[%s205 + $0x4] sm:$0xf]
        %v284 = vld [vmem:[%s205 + $0x8] sm:$0xf]
        %v285 = vld [vmem:[%s205 + $0xc] sm:$0xf]
        %v286 = vld [vmem:[%s205 + $0x10] sm:$0xf]
        %v287 = vld [vmem:[%s205 + $0x14] sm:$0xf]
        %v288 = vld [vmem:[%s205 + $0x18] sm:$0xf]
        %v289 = vld [vmem:[%s205 + $0x1c] sm:$0xf]
        %v290 = vld [vmem:[%s205 + $0x20] sm:$0xf]
        %v291 = vld [vmem:[%s205 + $0x24] sm:$0xf]
        %v292 = vld [vmem:[%s205 + $0x28] sm:$0xf]
        %v293 = vld [vmem:[%s205 + $0x2c] sm:$0xf]
        %v294 = vld [vmem:[%s205 + $0x30] sm:$0xf]
        %v295 = vld [vmem:[%s205 + $0x34] sm:$0xf]
        %v296 = vld [vmem:[%s205 + $0x38] sm:$0xf]
        %v297 = vld [vmem:[%s205 + $0x3c] sm:$0xf]
        %v314 = vunpack.c.l.b16 %v266
        %v315 = vunpack.c.l.b16 %v267
        %v316 = vunpack.c.l.b16 %v268
        %v317 = vunpack.c.l.b16 %v269
        %v318 = vunpack.c.l.b16 %v270
        %v319 = vunpack.c.l.b16 %v271
        %v320 = vunpack.c.l.b16 %v272
        %v321 = vunpack.c.l.b16 %v273
        %v322 = vunpack.c.l.b16 %v274
        %v323 = vunpack.c.l.b16 %v275
        %v324 = vunpack.c.l.b16 %v276
        %v325 = vunpack.c.l.b16 %v277
        %v326 = vunpack.c.l.b16 %v278
        %v327 = vunpack.c.l.b16 %v279
        %v328 = vunpack.c.l.b16 %v280
        %v329 = vunpack.c.l.b16 %v281
        %v330 = vpack.c.b16 %v315, %v314
        %v331 = vpack.c.b16 %v317, %v316
        %v332 = vpack.c.b16 %v319, %v318
        %v333 = vpack.c.b16 %v321, %v320
        %v334 = vpack.c.b16 %v323, %v322
        %v335 = vpack.c.b16 %v325, %v324
        %v336 = vpack.c.b16 %v327, %v326
        %v337 = vpack.c.b16 %v329, %v328
        %v362 = vunpack.c.l.b16 %v282
        %v363 = vunpack.c.l.b16 %v283
        %v364 = vunpack.c.l.b16 %v284
        %v365 = vunpack.c.l.b16 %v285
        %v366 = vunpack.c.l.b16 %v286
        %v367 = vunpack.c.l.b16 %v287
        %v368 = vunpack.c.l.b16 %v288
        %v369 = vunpack.c.l.b16 %v289
        %v370 = vunpack.c.l.b16 %v290
        %v371 = vunpack.c.l.b16 %v291
        %v372 = vunpack.c.l.b16 %v292
        %v373 = vunpack.c.l.b16 %v293
        %v374 = vunpack.c.l.b16 %v294
        %v375 = vunpack.c.l.b16 %v295
        %v376 = vunpack.c.l.b16 %v296
        %v377 = vunpack.c.l.b16 %v297
        %v378 = vpack.c.b16 %v363, %v362
        %v379 = vpack.c.b16 %v365, %v364
        %v380 = vpack.c.b16 %v367, %v366
        %v381 = vpack.c.b16 %v369, %v368
        %v382 = vpack.c.b16 %v371, %v370
        %v383 = vpack.c.b16 %v373, %v372
        %v384 = vpack.c.b16 %v375, %v374
        %v385 = vpack.c.b16 %v377, %v376
        %394 = vmatpush.bf16.msra.mxu0 %v385
        %395 = vmatpush.bf16.msra.mxu0 %v384
        %396 = vmatpush.bf16.msra.mxu0 %v383
        %397 = vmatpush.bf16.msra.mxu0 %v382
        %398 = vmatpush.bf16.msra.mxu0 %v381
        %399 = vmatpush.bf16.msra.mxu0 %v380
        %400 = vmatpush.bf16.msra.mxu0 %v379
        %401 = vmatpush.bf16.msra.mxu0 %v378
        %402 = vmatmul.bf16.gmra.mxu0 %v330
        %v403 = vpop.f32.mrf.mxu0
        %v404 = vadd.f32 0.0, %v403
        %v405 = vpop.f32.mrf.mxu0
        %v406 = vadd.f32 0.0, %v405
        %407 = vmatmul.bf16.gmra.mxu0 %v331
        %v408 = vpop.f32.mrf.mxu0
        %v409 = vadd.f32 0.0, %v408
        %v410 = vpop.f32.mrf.mxu0
        %v411 = vadd.f32 0.0, %v410
        %412 = vmatmul.bf16.gmra.mxu0 %v332
        %v413 = vpop.f32.mrf.mxu0
        %v414 = vadd.f32 0.0, %v413
        %v415 = vpop.f32.mrf.mxu0
        %v416 = vadd.f32 0.0, %v415
        %417 = vmatmul.bf16.gmra.mxu0 %v333
        %v418 = vpop.f32.mrf.mxu0
        %v419 = vadd.f32 0.0, %v418
        %v420 = vpop.f32.mrf.mxu0
        %v421 = vadd.f32 0.0, %v420
        %422 = vmatmul.bf16.gmra.mxu0 %v334
        %v423 = vpop.f32.mrf.mxu0
        %v424 = vadd.f32 0.0, %v423
        %v425 = vpop.f32.mrf.mxu0
        %v426 = vadd.f32 0.0, %v425
        %427 = vmatmul.bf16.gmra.mxu0 %v335
        %v428 = vpop.f32.mrf.mxu0
        %v429 = vadd.f32 0.0, %v428
        %v430 = vpop.f32.mrf.mxu0
        %v431 = vadd.f32 0.0, %v430
        %432 = vmatmul.bf16.gmra.mxu0 %v336
        %v433 = vpop.f32.mrf.mxu0
        %v434 = vadd.f32 0.0, %v433
        %v435 = vpop.f32.mrf.mxu0
        %v436 = vadd.f32 0.0, %v435
        %437 = vmatmul.bf16.gmra.mxu0 %v337
        %v438 = vpop.f32.mrf.mxu0
        %v439 = vadd.f32 0.0, %v438
        %v440 = vpop.f32.mrf.mxu0
        %v441 = vadd.f32 0.0, %v440
        %442 = vdwg.mxu0
        %v443 = vadd.f32 %v250, %v404
        %v444 = vadd.f32 %v251, %v406
        %v445 = vadd.f32 %v252, %v409
        %v446 = vadd.f32 %v253, %v411
        %v447 = vadd.f32 %v254, %v414
        %v448 = vadd.f32 %v255, %v416
        %v449 = vadd.f32 %v256, %v419
        %v450 = vadd.f32 %v257, %v421
        %v451 = vadd.f32 %v258, %v424
        %v452 = vadd.f32 %v259, %v426
        %v453 = vadd.f32 %v260, %v429
        %v454 = vadd.f32 %v261, %v431
        %v455 = vadd.f32 %v262, %v434
        %v456 = vadd.f32 %v263, %v436
        %v457 = vadd.f32 %v264, %v439
        %v458 = vadd.f32 %v265, %v441
        %459 = vst [vmem:[#allocation2] sm:$0xff] %v443
        %460 = vst [vmem:[#allocation2 + $0x8] sm:$0xff] %v444
        %461 = vst [vmem:[#allocation2 + $0x10] sm:$0xff] %v445
        %462 = vst [vmem:[#allocation2 + $0x18] sm:$0xff] %v446
        %463 = vst [vmem:[#allocation2 + $0x20] sm:$0xff] %v447
        %464 = vst [vmem:[#allocation2 + $0x28] sm:$0xff] %v448
        %465 = vst [vmem:[#allocation2 + $0x30] sm:$0xff] %v449
        %466 = vst [vmem:[#allocation2 + $0x38] sm:$0xff] %v450
        %467 = vst [vmem:[#allocation2 + $0x40] sm:$0xff] %v451
        %468 = vst [vmem:[#allocation2 + $0x48] sm:$0xff] %v452
        %469 = vst [vmem:[#allocation2 + $0x50] sm:$0xff] %v453
        %470 = vst [vmem:[#allocation2 + $0x58] sm:$0xff] %v454
        %471 = vst [vmem:[#allocation2 + $0x60] sm:$0xff] %v455
        %472 = vst [vmem:[#allocation2 + $0x68] sm:$0xff] %v456
        %473 = vst [vmem:[#allocation2 + $0x70] sm:$0xff] %v457
        %474 = vst [vmem:[#allocation2 + $0x78] sm:$0xff] %v458
        %p475 = scmp.eq.s32.totalorder %s27, 4
        // Predicated region
        $region41: #{tpu_custom_call.1} parent=27 // pred_check
          %p476 = pneg %p475
        $region42: #{tpu_custom_call.1} parent=27 // pred_check_branch
          %478 = sbr.rel (%p476) target = $region44
        $region43: #{tpu_custom_call.1} parent=27 // pred_region
          %v479 = vld [vmem:[#allocation2] sm:$0xff]
          %v480 = vld [vmem:[#allocation2 + $0x8] sm:$0xff]
          %v481 = vld [vmem:[#allocation2 + $0x10] sm:$0xff]
          %v482 = vld [vmem:[#allocation2 + $0x18] sm:$0xff]
          %v483 = vld [vmem:[#allocation2 + $0x20] sm:$0xff]
          %v484 = vld [vmem:[#allocation2 + $0x28] sm:$0xff]
          %v485 = vld [vmem:[#allocation2 + $0x30] sm:$0xff]
          %v486 = vld [vmem:[#allocation2 + $0x38] sm:$0xff]
          %v487 = vld [vmem:[#allocation2 + $0x40] sm:$0xff]
          %v488 = vld [vmem:[#allocation2 + $0x48] sm:$0xff]
          %v489 = vld [vmem:[#allocation2 + $0x50] sm:$0xff]
          %v490 = vld [vmem:[#allocation2 + $0x58] sm:$0xff]
          %v491 = vld [vmem:[#allocation2 + $0x60] sm:$0xff]
          %v492 = vld [vmem:[#allocation2 + $0x68] sm:$0xff]
          %v493 = vld [vmem:[#allocation2 + $0x70] sm:$0xff]
          %v494 = vld [vmem:[#allocation2 + $0x78] sm:$0xff]
          %v495 = vpack.c.bf16 %v479, %v479
          %v496 = vpack.c.bf16 %v480, %v480
          %v497 = vpack.c.bf16 %v481, %v481
          %v498 = vpack.c.bf16 %v482, %v482
          %v499 = vpack.c.bf16 %v483, %v483
          %v500 = vpack.c.bf16 %v484, %v484
          %v501 = vpack.c.bf16 %v485, %v485
          %v502 = vpack.c.bf16 %v486, %v486
          %v503 = vpack.c.bf16 %v487, %v487
          %v504 = vpack.c.bf16 %v488, %v488
          %v505 = vpack.c.bf16 %v489, %v489
          %v506 = vpack.c.bf16 %v490, %v490
          %v507 = vpack.c.bf16 %v491, %v491
          %v508 = vpack.c.bf16 %v492, %v492
          %v509 = vpack.c.bf16 %v493, %v493
          %v510 = vpack.c.bf16 %v494, %v494
          %511 = vst [vmem:[#allocation8] sm:$0xf] %v495
          %512 = vst [vmem:[#allocation8 + $0x4] sm:$0xf] %v496
          %513 = vst [vmem:[#allocation8 + $0x8] sm:$0xf] %v497
          %514 = vst [vmem:[#allocation8 + $0xc] sm:$0xf] %v498
          %515 = vst [vmem:[#allocation8 + $0x10] sm:$0xf] %v499
          %516 = vst [vmem:[#allocation8 + $0x14] sm:$0xf] %v500
          %517 = vst [vmem:[#allocation8 + $0x18] sm:$0xf] %v501
          %518 = vst [vmem:[#allocation8 + $0x1c] sm:$0xf] %v502
          %519 = vst [vmem:[#allocation8 + $0x20] sm:$0xf] %v503
          %520 = vst [vmem:[#allocation8 + $0x24] sm:$0xf] %v504
          %521 = vst [vmem:[#allocation8 + $0x28] sm:$0xf] %v505
          %522 = vst [vmem:[#allocation8 + $0x2c] sm:$0xf] %v506
          %523 = vst [vmem:[#allocation8 + $0x30] sm:$0xf] %v507
          %524 = vst [vmem:[#allocation8 + $0x34] sm:$0xf] %v508
          %525 = vst [vmem:[#allocation8 + $0x38] sm:$0xf] %v509
          %526 = vst [vmem:[#allocation8 + $0x3c] sm:$0xf] %v510
        $region44: #{tpu_custom_call.1} parent=27 // pred_fallthru
          _
        // Predicated region
        $region45: #{tpu_custom_call.1} parent=27 // pred_check
          %p527 = pneg %p115
        $region46: #{tpu_custom_call.1} parent=27 // pred_check_branch
          %529 = sbr.rel (%p527) target = $region48
        $region47: #{tpu_custom_call.1} parent=27 // pred_region
          %s530 = smul.u32 16, %s25
          %532 = vsyncadd [#allocation5], 0
          %s533 = sadd.s32 %s26, %s530
          %s534 = smul.addr %s533, 4
          %s535 = scalar_lea.hbm %s2, %s534
          %s536 = sshll.u32 [#allocation8], 4
          %s537 = int_to_ptr.vmem [resolvable:$true] %s536
          %s538 = sshll.u32 %s535, 4
          %s539 = int_to_ptr.hbm [resolvable:$true] %s538
          %544 = dma.vmem_to_hbm [thread:$0]  %s537, 1024, %s539, [#allocation5], 64, 64, 4
        $region48: #{tpu_custom_call.1} parent=27 // pred_fallthru
          _
        // Predicated region
        $region49: #{tpu_custom_call.1} parent=27 // pred_check
          %p545 = pneg %p115
        $region50: #{tpu_custom_call.1} parent=27 // pred_check_branch
          %547 = sbr.rel (%p545) target = $region52
        $region51: #{tpu_custom_call.1} parent=27 // pred_region
          %549 = dma.done [#allocation5], 1024
        $region52: #{tpu_custom_call.1} parent=27 // pred_fallthru
          _
      $region28: #{tpu_custom_call.1} parent=5 // pred_fallthru
        _
      %p550 = scmp.le.s32.totalorder 2, %s15
      // Predicated region
      $region53: #{tpu_custom_call.1} parent=5 // pred_check
        %p551 = pneg %p550
      $region54: #{tpu_custom_call.1} parent=5 // pred_check_branch
        %553 = sbr.rel (%p551) target = $region56
      $region55: #{tpu_custom_call.1} parent=5 // pred_region
        %s554 = ssub.s32 %s15, 2
      $region56: #{tpu_custom_call.1} parent=5 // pred_fallthru
        _
    $region6: #{tpu_custom_call.1} parent=1 // loop_footer
      %s19 = sadd.s32 1, %s15
    $region7: #{tpu_custom_call.1} parent=1 // loop_footer_branch
      %14 = sbr.rel target = $region3
    $region8: #{tpu_custom_call.1} parent=1 // loop_exit
      _
    %555 = vsyncpa [#allocation4], 1
    %s556 = scalar_lea.sflag [#allocation4], 1
    %557 = vsyncpa %s556, 1
    %558 = vsyncpa [#allocation7], 1
    %s559 = scalar_lea.sflag [#allocation7], 1
    %560 = vsyncpa %s559, 1
    %561 = vsyncpa [#allocation5], 1
    %s562 = scalar_lea.sflag [#allocation5], 1
    %563 = vsyncpa %s562, 1

</llo_original>
